<compile_context>
chip_gen: v5e
topology: v5e:2x2
jax: 0.10.0
libtpu: 0.0.40
codegen_flags: <defaults>
</compile_context>

<pallas_src>
import jax
import jax.numpy as jnp
from jax.experimental import pallas as pl
from jax.experimental.pallas import tpu as pltpu  # noqa: F401  (TPU backend)


# --------------------------------------------------------------------------
# helpers
# --------------------------------------------------------------------------
def _full_spec(shape):
    """Whole-array-in-VMEM BlockSpec (no grid)."""
    return pl.BlockSpec(shape, lambda: (0,) * len(shape))


# --------------------------------------------------------------------------
# fused Pallas kernel: all 4 views, both projections, batch-softmax, weighted sum
# --------------------------------------------------------------------------
def _attention_module_kernel(xv_ref, vu_ref, w_ref, o_ref):
    # xv_ref: (4, B, L)  view-major stacked latents (sublane/lane dense)
    # vu_ref: (L, 2H)    columns [:H] = V.T, [H:] = U.T  (single lane-dense projection)
    # w_ref:  (1, H)     w transposed to a lane row
    # o_ref:  (B, L)
    n_views, B, L = xv_ref.shape
    H = w_ref.shape[1]

    x = xv_ref[...]                                   # (4, B, L)
    x2d = x.reshape(n_views * B, L)                   # (4B, L), row = v*B + b

    # One MXU pass for both projections of all 4 views.
    proj = jnp.dot(x2d, vu_ref[...], preferred_element_type=jnp.float32)   # (4B, 2H)
    gate = jnp.tanh(proj[:, :H]) * jax.nn.sigmoid(proj[:, H:])             # (4B, H)

    # score s = w^T (x1*x2): lane reduce instead of an N=1 matmul.
    s = jnp.sum(gate * w_ref[...], axis=-1, keepdims=True)                 # (4B, 1)
    s = s.reshape(n_views, B, 1)                                           # (4, B, 1)

    # torch: F.softmax(dim=1) of a (1, B) row == softmax over the batch, per view.
    s = s - jnp.max(s, axis=1, keepdims=True)
    e = jnp.exp(s)
    a = e / jnp.sum(e, axis=1, keepdims=True)                              # (4, B, 1)

    # out = sum_v a_v * x_v
    o_ref[...] = jnp.sum(a * x, axis=0)                                    # (B, L)


def attention_module_forward(x, U, V, w):
    """x: (B, 4, L) float32, U/V: (H, L), w: (H, 1)  ->  (B, L)."""
    B, n_views, L = x.shape
    H = U.shape[0]
    assert n_views == 4 and V.shape == (H, L) and w.shape == (H, 1)

    # Tiny host-side layout prep (fused by XLA, never re-done inside the kernel):
    xv = jnp.transpose(x, (1, 0, 2))                   # (4, B, L) view-major
    vu = jnp.concatenate([V.T, U.T], axis=1)           # (L, 2H)
    w_row = w.T                                        # (1, H)

    return pl.pallas_call(
        _attention_module_kernel,
        out_shape=jax.ShapeDtypeStruct((B, L), jnp.float32),
        in_specs=[
            _full_spec((4, B, L)),
            _full_spec((L, 2 * H)),
            _full_spec((1, H)),
        ],
        out_specs=_full_spec((B, L)),
    )(xv, vu, w_row)


# --------------------------------------------------------------------------
# pure-JAX reference (direct transcription of the PyTorch module)
# --------------------------------------------------------------------------
def _reference_forward(x, U, V, w):
    def att_weight(view):                              # view: (B, L)
        x1 = jnp.tanh(V @ view.T)                      # (H, B)
        x2 = jax.nn.sigmoid(U @ view.T)                # (H, B)
        return jax.nn.softmax(w.T @ (x1 * x2), axis=1)  # (1, B): softmax over batch

    out = att_weight(x[:, 0, :]).reshape(-1, 1) * x[:, 0, :]
    for i in range(1, 4):
        out = out + att_weight(x[:, i, :]).reshape(-1, 1) * x[:, i, :]
    return out


# --------------------------------------------------------------------------
# deterministic parameter init (xavier_uniform_, matching the module)
# --------------------------------------------------------------------------
def _xavier(key, shape):
    fan_out, fan_in = shape[0], shape[1]
    lim = (6.0 / (fan_in + fan_out)) ** 0.5
    return jax.random.uniform(key, shape, jnp.float32, -lim, lim)


# --------------------------------------------------------------------------
if __name__ == "__main__":
    B, VIEWS = 8, 4
    LATENT, HIDDEN = 128, 64   # module defaults: latent_vectors=128, hidden_units=64

    root = jax.random.PRNGKey(0)
    kx, ku, kv, kw = jax.random.split(root, 4)
    x = jax.random.normal(kx, (B, VIEWS, LATENT), jnp.float32)
    U = _xavier(ku, (HIDDEN, LATENT))
    V = _xavier(kv, (HIDDEN, LATENT))
    w = _xavier(kw, (HIDDEN, 1))

    fwd = jax.jit(attention_module_forward)
    out = jax.block_until_ready(fwd(x, U, V, w))

    ref = _reference_forward(x, U, V, w)
    assert out.shape == (B, LATENT) and out.dtype == jnp.float32
    assert bool(jnp.all(jnp.isfinite(out)))
    # tolerance accounts for MXU bf16-pass default matmul precision vs XLA reference
    assert bool(jnp.allclose(out, ref, rtol=5e-2, atol=5e-2)), float(
        jnp.max(jnp.abs(out - ref)))
    print("KERNEL_OK")
</pallas_src>

<mosaic_0001>
module attributes {stable_mosaic.version = 11 : i64} {
  func.func @_attention_module_kernel(%arg0: memref<4x8x128xf32, #tpu.memory_space<vmem>>, %arg1: memref<128x128xf32, #tpu.memory_space<vmem>>, %arg2: memref<1x64xf32, #tpu.memory_space<vmem>>, %arg3: memref<8x128xf32, #tpu.memory_space<vmem>>) attributes {dimension_semantics = [], scalar_prefetch = 0 : i64, scratch_operands = 0 : i64, tpu.core_type = #tpu.core_type<tc>} {
    %c0 = arith.constant 0 : index
    %c0_0 = arith.constant 0 : index
    %c0_1 = arith.constant 0 : index
    %0 = vector.load %arg0[%c0, %c0_0, %c0_1] : memref<4x8x128xf32, #tpu.memory_space<vmem>>, vector<4x8x128xf32>
    %1 = vector.shape_cast %0 : vector<4x8x128xf32> to vector<32x128xf32>
    %c0_2 = arith.constant 0 : index
    %c0_3 = arith.constant 0 : index
    %2 = vector.load %arg1[%c0_2, %c0_3] : memref<128x128xf32, #tpu.memory_space<vmem>>, vector<128x128xf32>
    %cst = arith.constant dense<0.000000e+00> : vector<32x128xf32>
    %3 = tpu.matmul %1, %2, %cst {dimension_numbers = #tpu.dot_dimension_numbers<[1], [0], [0], [1], [0, 0, 1, 1], [], []>} : vector<32x128xf32>, vector<128x128xf32>, vector<32x128xf32> -> vector<32x128xf32>
    %4 = vector.extract_strided_slice %3 {offsets = [0, 0], sizes = [32, 64], strides = [1, 1]} : vector<32x128xf32> to vector<32x64xf32>
    %5 = math.tanh %4 : vector<32x64xf32>
    %6 = vector.extract_strided_slice %3 {offsets = [0, 64], sizes = [32, 64], strides = [1, 1]} : vector<32x128xf32> to vector<32x64xf32>
    %7 = arith.negf %6 : vector<32x64xf32>
    %8 = math.exp %7 : vector<32x64xf32>
    %cst_4 = arith.constant 1.000000e+00 : f32
    %9 = vector.broadcast %cst_4 : f32 to vector<32x64xf32>
    %10 = arith.addf %9, %8 : vector<32x64xf32>
    %11 = arith.divf %9, %10 : vector<32x64xf32>
    %12 = arith.mulf %5, %11 : vector<32x64xf32>
    %c0_5 = arith.constant 0 : index
    %c0_6 = arith.constant 0 : index
    %13 = vector.load %arg2[%c0_5, %c0_6] : memref<1x64xf32, #tpu.memory_space<vmem>>, vector<1x64xf32>
    %14 = vector.broadcast %13 : vector<1x64xf32> to vector<32x64xf32>
    %15 = arith.mulf %12, %14 : vector<32x64xf32>
    %cst_7 = arith.constant dense<0.000000e+00> : vector<32xf32>
    %16 = vector.multi_reduction <add>, %15, %cst_7 [1] : vector<32x64xf32> to vector<32xf32>
    %17 = vector.shape_cast %16 : vector<32xf32> to vector<32x1xf32>
    %18 = vector.shape_cast %17 : vector<32x1xf32> to vector<4x8x1xf32>
    %cst_8 = arith.constant dense<0xFF800000> : vector<4x1xf32>
    %19 = vector.multi_reduction <maximumf>, %18, %cst_8 [1] : vector<4x8x1xf32> to vector<4x1xf32>
    %20 = vector.shape_cast %19 : vector<4x1xf32> to vector<4x1x1xf32>
    %21 = vector.broadcast %20 : vector<4x1x1xf32> to vector<4x8x1xf32>
    %22 = arith.subf %18, %21 : vector<4x8x1xf32>
    %23 = math.exp %22 : vector<4x8x1xf32>
    %cst_9 = arith.constant dense<0.000000e+00> : vector<4x1xf32>
    %24 = vector.multi_reduction <add>, %23, %cst_9 [1] : vector<4x8x1xf32> to vector<4x1xf32>
    %25 = vector.shape_cast %24 : vector<4x1xf32> to vector<4x1x1xf32>
    %26 = vector.broadcast %25 : vector<4x1x1xf32> to vector<4x8x1xf32>
    %27 = arith.divf %23, %26 : vector<4x8x1xf32>
    %28 = vector.broadcast %27 : vector<4x8x1xf32> to vector<4x8x128xf32>
    %29 = arith.mulf %28, %0 : vector<4x8x128xf32>
    %cst_10 = arith.constant dense<0.000000e+00> : vector<8x128xf32>
    %30 = vector.multi_reduction <add>, %29, %cst_10 [0] : vector<4x8x128xf32> to vector<8x128xf32>
    %c0_11 = arith.constant 0 : index
    %c0_12 = arith.constant 0 : index
    %31 = vector.load %arg3[%c0_11, %c0_12] : memref<8x128xf32, #tpu.memory_space<vmem>>, vector<8x128xf32>
    tpu.vector_store %arg3[%c0_11, %c0_12], %30 {strides = array<i32>} : memref<8x128xf32, #tpu.memory_space<vmem>>, vector<8x128xf32>,
    return
  }
}

</mosaic_0001>

<llo_original>
// kernel: attention_module_forward.1
$region0: #{attention_module_forward.1}
  #allocation0 [shape = 'u32[]', space=smem, size = 0x4, offset = 0x4, fixed_abs, tag = 'smem constant byte address 0x4 - core index']
  #allocation1 [shape = 'u32[72,128]{1,0:T(1,128)}', space=vmem, size = 0x9000, scoped, tag = 'internal scratch']
  %s0 = inlined_call_operand.vmem [shape: f32[4,8,128], index: 0, kind: input, shape index: {}]
  %s1 = inlined_call_operand.vmem [shape: f32[128,128], index: 1, kind: input, shape index: {}]
  %s2 = inlined_call_operand.vmem [shape: f32[1,64], index: 2, kind: input, shape index: {}]
  %s3 = inlined_call_operand.hbm [shape: f32[8,128], index: 3, kind: output, shape index: {}]
  %s4 = sld [smem:[#allocation0]]
  $region22: #{attention_module_forward.1} parent=0
    _
  %s6 = ssub.s32 1, %s4
  %s7 = scalar_select 0, %s6, %s4
  $region1: #{attention_module_forward.1} parent=0
    #allocation2 [shape = 'u8[4096]{0}', space=vmem, size = 0x1000, scoped, tag = 'output window, operand 0, single buffered']
    #allocation3 [shape = 's32[1]{0}', space=sflag, size = 0x4, scoped, tag = 'scoped memory for attention_module_forward.1']
    %8 = vsyncpa [#allocation3], 0
    // Predicated region
    $region2: #{attention_module_forward.1} parent=1 // pred_check
      _
    $region3: #{attention_module_forward.1} parent=1 // pred_check_branch
      %10 = sbr.rel (0) target = $region5
    $region4: #{attention_module_forward.1} parent=1 // pred_region
      _
    $region5: #{attention_module_forward.1} parent=1 // pred_fallthru
      _
    // Predicated region
    $region6: #{attention_module_forward.1} parent=1 // pred_check
      _
    $region7: #{attention_module_forward.1} parent=1 // pred_check_branch
      %12 = sbr.rel (0) target = $region9
    $region8: #{attention_module_forward.1} parent=1 // pred_region
      _
    $region9: #{attention_module_forward.1} parent=1 // pred_fallthru
      _
    // Predicated region
    $region10: #{attention_module_forward.1} parent=1 // pred_check
      _
    $region11: #{attention_module_forward.1} parent=1 // pred_check_branch
      %14 = sbr.rel (0) target = $region13
    $region12: #{attention_module_forward.1} parent=1 // pred_region
      _
    $region13: #{attention_module_forward.1} parent=1 // pred_fallthru
      _
    %v15 = vld [vmem:[%s0] sm:$0xff]
    %v16 = vld [vmem:[%s0 + $0x8] sm:$0xff]
    %v17 = vld [vmem:[%s0 + $0x10] sm:$0xff]
    %v18 = vld [vmem:[%s0 + $0x18] sm:$0xff]
    %v19 = vld [vmem:[%s1] sm:$0xff]
    %v20 = vld [vmem:[%s1 + $0x8] sm:$0xff]
    %v21 = vld [vmem:[%s1 + $0x10] sm:$0xff]
    %v22 = vld [vmem:[%s1 + $0x18] sm:$0xff]
    %v23 = vld [vmem:[%s1 + $0x20] sm:$0xff]
    %v24 = vld [vmem:[%s1 + $0x28] sm:$0xff]
    %v25 = vld [vmem:[%s1 + $0x30] sm:$0xff]
    %v26 = vld [vmem:[%s1 + $0x38] sm:$0xff]
    %v27 = vld [vmem:[%s1 + $0x40] sm:$0xff]
    %v28 = vld [vmem:[%s1 + $0x48] sm:$0xff]
    %v29 = vld [vmem:[%s1 + $0x50] sm:$0xff]
    %v30 = vld [vmem:[%s1 + $0x58] sm:$0xff]
    %v31 = vld [vmem:[%s1 + $0x60] sm:$0xff]
    %v32 = vld [vmem:[%s1 + $0x68] sm:$0xff]
    %v33 = vld [vmem:[%s1 + $0x70] sm:$0xff]
    %v34 = vld [vmem:[%s1 + $0x78] sm:$0xff]
    %35 = vmatpush.msra.mxu0 %v34
    %36 = vmatpush.msra.mxu0 %v33
    %37 = vmatpush.msra.mxu0 %v32
    %38 = vmatpush.msra.mxu0 %v31
    %39 = vmatpush.msra.mxu0 %v30
    %40 = vmatpush.msra.mxu0 %v29
    %41 = vmatpush.msra.mxu0 %v28
    %42 = vmatpush.msra.mxu0 %v27
    %43 = vmatpush.msra.mxu0 %v26
    %44 = vmatpush.msra.mxu0 %v25
    %45 = vmatpush.msra.mxu0 %v24
    %46 = vmatpush.msra.mxu0 %v23
    %47 = vmatpush.msra.mxu0 %v22
    %48 = vmatpush.msra.mxu0 %v21
    %49 = vmatpush.msra.mxu0 %v20
    %50 = vmatpush.msra.mxu0 %v19
    %51 = vmatmul.f32.gmra.mxu0 %v15
    %v52 = vpop.f32.mrf.mxu0
    %v53 = vadd.f32 0.0, %v52
    %54 = vmatmul.f32.gmra.mxu0 %v16
    %v55 = vpop.f32.mrf.mxu0
    %v56 = vadd.f32 0.0, %v55
    %57 = vmatmul.f32.gmra.mxu0 %v17
    %v58 = vpop.f32.mrf.mxu0
    %v59 = vadd.f32 0.0, %v58
    %60 = vmatmul.f32.gmra.mxu0 %v18
    %v61 = vpop.f32.mrf.mxu0
    %v62 = vadd.f32 0.0, %v61
    %63 = vdwg.mxu0
    %v64 = vtanh.pop %v53
    %v65 = vtanh.pop %v56
    %v66 = vtanh.pop %v59
    %v67 = vtanh.pop %v62
    %v68 = vxor.u32 %v53, 2147483648
    %v69 = vxor.u32 %v56, 2147483648
    %v70 = vxor.u32 %v59, 2147483648
    %v71 = vxor.u32 %v62, 2147483648
    %v72 = vmul.f32 %v68, 1.442695
    %v73 = vpow.pop %v72
    %v74 = vmul.f32 %v69, 1.442695
    %v75 = vpow.pop %v74
    %v76 = vmul.f32 %v70, 1.442695
    %v77 = vpow.pop %v76
    %v78 = vmul.f32 %v71, 1.442695
    %v79 = vpow.pop %v78
    %v80 = vadd.f32 %v73, 1.0
    %v81 = vadd.f32 %v75, 1.0
    %v82 = vadd.f32 %v77, 1.0
    %v83 = vadd.f32 %v79, 1.0
    %v84 = vrcp.pop %v80
    %v85 = vmul.f32 %v80, %v84
    %v86 = vsub.f32 1.0, %v85
    %v87 = vmul.f32 %v84, %v86
    %v88 = vadd.f32 %v84, %v87
    %vm89 = vweird.f32 %v80
    %vm90 = vweird.f32 %v84
    %vm91 = vmor %vm89, %vm90
    %v92 = vsel %vm91, %v84, %v88
    %v93 = vand.u32 2147483647, %v80
    %vm94 = vcmp.eq.f32.partialorder %v93, 8.507059e+37
    %v95 = vand.u32 %v80, 2147483648
    %v96 = vor.u32 1.1754944e-38, %v95
    %v97 = vsel %vm94, %v96, %v92
    %v98 = vmul.f32 1.0, %v97
    %v99 = vrcp.pop %v81
    %v100 = vmul.f32 %v81, %v99
    %v101 = vsub.f32 1.0, %v100
    %v102 = vmul.f32 %v99, %v101
    %v103 = vadd.f32 %v99, %v102
    %vm104 = vweird.f32 %v81
    %vm105 = vweird.f32 %v99
    %vm106 = vmor %vm104, %vm105
    %v107 = vsel %vm106, %v99, %v103
    %v108 = vand.u32 2147483647, %v81
    %vm109 = vcmp.eq.f32.partialorder %v108, 8.507059e+37
    %v110 = vand.u32 %v81, 2147483648
    %v111 = vor.u32 1.1754944e-38, %v110
    %v112 = vsel %vm109, %v111, %v107
    %v113 = vmul.f32 1.0, %v112
    %v114 = vrcp.pop %v82
    %v115 = vmul.f32 %v82, %v114
    %v116 = vsub.f32 1.0, %v115
    %v117 = vmul.f32 %v114, %v116
    %v118 = vadd.f32 %v114, %v117
    %vm119 = vweird.f32 %v82
    %vm120 = vweird.f32 %v114
    %vm121 = vmor %vm119, %vm120
    %v122 = vsel %vm121, %v114, %v118
    %v123 = vand.u32 2147483647, %v82
    %vm124 = vcmp.eq.f32.partialorder %v123, 8.507059e+37
    %v125 = vand.u32 %v82, 2147483648
    %v126 = vor.u32 1.1754944e-38, %v125
    %v127 = vsel %vm124, %v126, %v122
    %v128 = vmul.f32 1.0, %v127
    %v129 = vrcp.pop %v83
    %v130 = vmul.f32 %v83, %v129
    %v131 = vsub.f32 1.0, %v130
    %v132 = vmul.f32 %v129, %v131
    %v133 = vadd.f32 %v129, %v132
    %vm134 = vweird.f32 %v83
    %vm135 = vweird.f32 %v129
    %vm136 = vmor %vm134, %vm135
    %v137 = vsel %vm136, %v129, %v133
    %v138 = vand.u32 2147483647, %v83
    %vm139 = vcmp.eq.f32.partialorder %v138, 8.507059e+37
    %v140 = vand.u32 %v83, 2147483648
    %v141 = vor.u32 1.1754944e-38, %v140
    %v142 = vsel %vm139, %v141, %v137
    %v143 = vmul.f32 1.0, %v142
    %148 = vrot.lane.b32.xlu0 %v98, 64
    %v149 = vpop.permute.xlu0 %148
    %150 = vrot.lane.b32.xlu0 %v113, 64
    %v151 = vpop.permute.xlu0 %150
    %152 = vrot.lane.b32.xlu0 %v128, 64
    %v153 = vpop.permute.xlu0 %152
    %154 = vrot.lane.b32.xlu0 %v143, 64
    %v155 = vpop.permute.xlu0 %154
    %v160 = vmul.f32 %v64, %v149
    %v161 = vmul.f32 %v65, %v151
    %v162 = vmul.f32 %v66, %v153
    %v163 = vmul.f32 %v67, %v155
    %v164 = vld [vmem:[%s2] sm:$0x1]
    %v166 = vperm.slane %v164, 0
    %v168 = vmul.f32 %v160, %v166
    %v169 = vmul.f32 %v161, %v166
    %v170 = vmul.f32 %v162, %v166
    %v171 = vmul.f32 %v163, %v166
    %vm172 = vcmask 523264
    %v173 = vsel %vm172, %v168, 0.0
    %174 = vadd.xlane.f32.xlu0 %v173
    %v175 = vpop.xlane.xlu0 %174
    %v176 = vsel %vm172, %v169, 0.0
    %177 = vadd.xlane.f32.xlu0 %v176
    %v178 = vpop.xlane.xlu0 %177
    %v179 = vsel %vm172, %v170, 0.0
    %180 = vadd.xlane.f32.xlu0 %v179
    %v181 = vpop.xlane.xlu0 %180
    %v182 = vsel %vm172, %v171, 0.0
    %183 = vadd.xlane.f32.xlu0 %v182
    %v184 = vpop.xlane.xlu0 %183
    %v185 = vrot.slane %v175, 4
    %v186 = vmax.f32 %v175, %v185
    %v187 = vrot.slane %v186, 2
    %v188 = vmax.f32 %v186, %v187
    %v189 = vrot.slane %v188, 1
    %v190 = vmax.f32 %v188, %v189
    %v191 = vrot.slane %v178, 4
    %v192 = vmax.f32 %v178, %v191
    %v193 = vrot.slane %v192, 2
    %v194 = vmax.f32 %v192, %v193
    %v195 = vrot.slane %v194, 1
    %v196 = vmax.f32 %v194, %v195
    %v197 = vrot.slane %v181, 4
    %v198 = vmax.f32 %v181, %v197
    %v199 = vrot.slane %v198, 2
    %v200 = vmax.f32 %v198, %v199
    %v201 = vrot.slane %v200, 1
    %v202 = vmax.f32 %v200, %v201
    %v203 = vrot.slane %v184, 4
    %v204 = vmax.f32 %v184, %v203
    %v205 = vrot.slane %v204, 2
    %v206 = vmax.f32 %v204, %v205
    %v207 = vrot.slane %v206, 1
    %v208 = vmax.f32 %v206, %v207
    %v209 = vsub.f32 %v175, %v190
    %v210 = vsub.f32 %v178, %v196
    %v211 = vsub.f32 %v181, %v202
    %v212 = vsub.f32 %v184, %v208
    %v213 = vmul.f32 %v209, 1.442695
    %v214 = vpow.pop %v213
    %v215 = vmul.f32 %v210, 1.442695
    %v216 = vpow.pop %v215
    %v217 = vmul.f32 %v211, 1.442695
    %v218 = vpow.pop %v217
    %v219 = vmul.f32 %v212, 1.442695
    %v220 = vpow.pop %v219
    %v221 = vrot.slane %v214, 4
    %v222 = vadd.f32 %v214, %v221
    %v223 = vrot.slane %v222, 2
    %v224 = vadd.f32 %v222, %v223
    %v225 = vrot.slane %v224, 1
    %v226 = vadd.f32 %v224, %v225
    %v227 = vrot.slane %v216, 4
    %v228 = vadd.f32 %v216, %v227
    %v229 = vrot.slane %v228, 2
    %v230 = vadd.f32 %v228, %v229
    %v231 = vrot.slane %v230, 1
    %v232 = vadd.f32 %v230, %v231
    %v233 = vrot.slane %v218, 4
    %v234 = vadd.f32 %v218, %v233
    %v235 = vrot.slane %v234, 2
    %v236 = vadd.f32 %v234, %v235
    %v237 = vrot.slane %v236, 1
    %v238 = vadd.f32 %v236, %v237
    %v239 = vrot.slane %v220, 4
    %v240 = vadd.f32 %v220, %v239
    %v241 = vrot.slane %v240, 2
    %v242 = vadd.f32 %v240, %v241
    %v243 = vrot.slane %v242, 1
    %v244 = vadd.f32 %v242, %v243
    %v245 = vrcp.pop %v226
    %v246 = vmul.f32 %v226, %v245
    %v247 = vsub.f32 1.0, %v246
    %v248 = vmul.f32 %v245, %v247
    %v249 = vadd.f32 %v245, %v248
    %vm250 = vweird.f32 %v226
    %vm251 = vweird.f32 %v245
    %vm252 = vmor %vm250, %vm251
    %v253 = vsel %vm252, %v245, %v249
    %v254 = vand.u32 2147483647, %v226
    %vm255 = vcmp.eq.f32.partialorder %v254, 8.507059e+37
    %v256 = vand.u32 %v226, 2147483648
    %v257 = vor.u32 1.1754944e-38, %v256
    %v258 = vsel %vm255, %v257, %v253
    %v259 = vmul.f32 %v214, %v258
    %v260 = vrcp.pop %v232
    %v261 = vmul.f32 %v232, %v260
    %v262 = vsub.f32 1.0, %v261
    %v263 = vmul.f32 %v260, %v262
    %v264 = vadd.f32 %v260, %v263
    %vm265 = vweird.f32 %v232
    %vm266 = vweird.f32 %v260
    %vm267 = vmor %vm265, %vm266
    %v268 = vsel %vm267, %v260, %v264
    %v269 = vand.u32 2147483647, %v232
    %vm270 = vcmp.eq.f32.partialorder %v269, 8.507059e+37
    %v271 = vand.u32 %v232, 2147483648
    %v272 = vor.u32 1.1754944e-38, %v271
    %v273 = vsel %vm270, %v272, %v268
    %v274 = vmul.f32 %v216, %v273
    %v275 = vrcp.pop %v238
    %v276 = vmul.f32 %v238, %v275
    %v277 = vsub.f32 1.0, %v276
    %v278 = vmul.f32 %v275, %v277
    %v279 = vadd.f32 %v275, %v278
    %vm280 = vweird.f32 %v238
    %vm281 = vweird.f32 %v275
    %vm282 = vmor %vm280, %vm281
    %v283 = vsel %vm282, %v275, %v279
    %v284 = vand.u32 2147483647, %v238
    %vm285 = vcmp.eq.f32.partialorder %v284, 8.507059e+37
    %v286 = vand.u32 %v238, 2147483648
    %v287 = vor.u32 1.1754944e-38, %v286
    %v288 = vsel %vm285, %v287, %v283
    %v289 = vmul.f32 %v218, %v288
    %v290 = vrcp.pop %v244
    %v291 = vmul.f32 %v244, %v290
    %v292 = vsub.f32 1.0, %v291
    %v293 = vmul.f32 %v290, %v292
    %v294 = vadd.f32 %v290, %v293
    %vm295 = vweird.f32 %v244
    %vm296 = vweird.f32 %v290
    %vm297 = vmor %vm295, %vm296
    %v298 = vsel %vm297, %v290, %v294
    %v299 = vand.u32 2147483647, %v244
    %vm300 = vcmp.eq.f32.partialorder %v299, 8.507059e+37
    %v301 = vand.u32 %v244, 2147483648
    %v302 = vor.u32 1.1754944e-38, %v301
    %v303 = vsel %vm300, %v302, %v298
    %v304 = vmul.f32 %v220, %v303
    %v305 = vmul.f32 %v259, %v15
    %v306 = vmul.f32 %v274, %v16
    %v307 = vmul.f32 %v289, %v17
    %v308 = vmul.f32 %v304, %v18
    %v309 = vadd.f32 %v305, %v306
    %v310 = vadd.f32 %v309, %v307
    %v311 = vadd.f32 %v310, %v308
    %312 = vst [vmem:[#allocation2] sm:$0xff] %v311
    // Predicated region
    $region14: #{attention_module_forward.1} parent=1 // pred_check
      _
    $region15: #{attention_module_forward.1} parent=1 // pred_check_branch
      %314 = sbr.rel (0) target = $region17
    $region16: #{attention_module_forward.1} parent=1 // pred_region
      %316 = vsyncadd [#allocation3], 0
      %s318 = sshll.u32 [#allocation2], 4
      %s319 = int_to_ptr.vmem [resolvable:$true] %s318
      %s320 = sshll.u32 %s3, 4
      %s321 = int_to_ptr.hbm [resolvable:$true] %s320
      %323 = dma.vmem_to_hbm [thread:$0]  %s319, 128, %s321, [#allocation3]
    $region17: #{attention_module_forward.1} parent=1 // pred_fallthru
      _
    // Predicated region
    $region18: #{attention_module_forward.1} parent=1 // pred_check
      _
    $region19: #{attention_module_forward.1} parent=1 // pred_check_branch
      %325 = sbr.rel (0) target = $region21
    $region20: #{attention_module_forward.1} parent=1 // pred_region
      %327 = dma.done [#allocation3], 128
    $region21: #{attention_module_forward.1} parent=1 // pred_fallthru
      _
    %328 = vsyncpa [#allocation3], 1

</llo_original>
